<compile_context>
chip_gen: v6e
topology: v6e:2x2x1
jax: 0.10.0
libtpu: 0.0.40
codegen_flags: <defaults>
</compile_context>

<pallas_src>
import jax
import jax.numpy as jnp
from jax.experimental import pallas as pl
from jax.experimental.pallas import tpu as pltpu


# Below this size the pallas_call launch overhead dominates; let XLA emit the
# copy directly (per perf review: raise to the MiB range).
_MIN_PALLAS_BYTES = 2 * 1024 * 1024


def _pallas_clone(x: jax.Array) -> jax.Array:
    """Bit-exact copy of `x` into a fresh buffer via a direct HBM->HBM DMA."""
    orig_shape = x.shape
    total = x.size
    if total == 0:
        return jnp.copy(x)

    # Collapse leading dims -> (rows, lane). Keeping the original minor dim as
    # `lane` makes this reshape a free relabeling (no physical relayout), and
    # the DMA path has no (8, 128) BlockSpec constraints anyway.
    if x.ndim == 0:
        rows, lane = 1, 1
    else:
        lane = orig_shape[-1]
        rows = total // lane
    x2d = x.reshape(rows, lane)

    # 2 chunks when evenly splittable -> each v7x TensorCore copies half
    # (no effect on single-TC v5e/v6e beyond two sequential DMAs).
    num_chunks = 2 if (rows >= 2 and rows % 2 == 0) else 1
    rows_per_chunk = rows // num_chunks

    def kernel(x_hbm, o_hbm, sem):
        i = pl.program_id(0)
        start = i * rows_per_chunk
        cp = pltpu.make_async_copy(
            x_hbm.at[pl.ds(start, rows_per_chunk), :],
            o_hbm.at[pl.ds(start, rows_per_chunk), :],
            sem,
        )
        cp.start()
        cp.wait()

    out2d = pl.pallas_call(
        kernel,
        grid=(num_chunks,),
        in_specs=[pl.BlockSpec(memory_space=pl.ANY)],
        out_specs=pl.BlockSpec(memory_space=pl.ANY),
        out_shape=jax.ShapeDtypeStruct((rows, lane), x.dtype),
        scratch_shapes=[pltpu.SemaphoreType.DMA(())],
        compiler_params=pltpu.CompilerParams(
            dimension_semantics=("parallel",),
        ),
    )(x2d)

    return out2d.reshape(orig_shape)


def identity_split(residual: jax.Array) -> tuple[jax.Array, jax.Array]:
    """Identity that splits the input into two outputs.

    Mirrors PyTorch `(residual, residual.clone())`. First output is the input
    itself (immutable, no copy needed); second output is an independent buffer
    produced by an HBM->HBM DMA Pallas kernel (or `jnp.copy` for tiny inputs —
    note XLA may elide that copy under jit, which is numerically identical).
    """
    nbytes = residual.size * residual.dtype.itemsize
    if nbytes < _MIN_PALLAS_BYTES:
        return residual, jnp.copy(residual)
    return residual, _pallas_clone(residual)


if __name__ == "__main__":
    key = jax.random.PRNGKey(0)

    # 1) Small module-spec shape (batch=2, seq=8, d_model=32): dispatcher fast
    #    path, plus a direct call to the Pallas DMA clone to exercise the
    #    kernel at a small shape.
    small = jax.random.normal(key, (2, 8, 32), dtype=jnp.float32)
    s0, s1 = identity_split(small)
    jax.block_until_ready((s0, s1))
    assert s0.shape == small.shape and s1.shape == small.shape
    assert s0.dtype == small.dtype and s1.dtype == small.dtype
    assert bool(jnp.array_equal(s0, small))
    assert bool(jnp.array_equal(s1, small))

    s2 = _pallas_clone(small)
    jax.block_until_ready(s2)
    assert s2.shape == small.shape and s2.dtype == small.dtype
    assert bool(jnp.array_equal(s2, small))

    # 2) Larger residual stream (batch=4, seq=512, d_model=1024, f32 = 8 MiB):
    #    exercises the Pallas HBM->HBM DMA path via the dispatcher
    #    (2 chunks of 1024x1024 rows, one per TC on v7x).
    big = jax.random.normal(jax.random.PRNGKey(0), (4, 512, 1024), dtype=jnp.float32)
    b0, b1 = identity_split(big)
    jax.block_until_ready((b0, b1))
    assert b0.shape == big.shape and b1.shape == big.shape
    assert b0.dtype == big.dtype and b1.dtype == big.dtype
    assert bool(jnp.array_equal(b0, big))
    assert bool(jnp.array_equal(b1, big))

    print("KERNEL_OK")
</pallas_src>

<mosaic_0001>
module attributes {stable_mosaic.version = 11 : i64} {
  func.func @kernel(%arg0: i32, %arg1: memref<16x32xf32, #tpu.memory_space<any>>, %arg2: memref<16x32xf32, #tpu.memory_space<any>>, %arg3: memref<!tpu.dma_semaphore, #tpu.memory_space<semaphore_mem>>) attributes {dimension_semantics = [#tpu.dimension_semantics<parallel>], iteration_bounds = array<i64: 2>, scalar_prefetch = 0 : i64, scratch_operands = 1 : i64, tpu.core_type = #tpu.core_type<tc>, window_params = [{}, {}]} {
    %c8_i32 = arith.constant 8 : i32
    %0 = arith.muli %arg0, %c8_i32 : i32
    %c0_i32 = arith.constant 0 : i32
    %1 = tpu.memref_slice %arg1[%0, %c0_i32] : memref<16x32xf32, #tpu.memory_space<any>> -> memref<8x32xf32, #tpu.memory_space<any>>
    %c0_i32_0 = arith.constant 0 : i32
    %2 = tpu.memref_slice %arg2[%0, %c0_i32_0] : memref<16x32xf32, #tpu.memory_space<any>> -> memref<8x32xf32, #tpu.memory_space<any>>
    tpu.enqueue_dma source(%1 : memref<8x32xf32, #tpu.memory_space<any>>) target(%2 : memref<8x32xf32, #tpu.memory_space<any>>) target_semaphore(%arg3 : memref<!tpu.dma_semaphore, #tpu.memory_space<semaphore_mem>>)
    %c0_i32_1 = arith.constant 0 : i32
    %3 = tpu.memref_slice %arg1[%0, %c0_i32_1] : memref<16x32xf32, #tpu.memory_space<any>> -> memref<8x32xf32, #tpu.memory_space<any>>
    %c0_i32_2 = arith.constant 0 : i32
    %4 = tpu.memref_slice %arg2[%0, %c0_i32_2] : memref<16x32xf32, #tpu.memory_space<any>> -> memref<8x32xf32, #tpu.memory_space<any>>
    tpu.wait_dma2 semaphore(%arg3 : memref<!tpu.dma_semaphore, #tpu.memory_space<semaphore_mem>>) src(%3 : memref<8x32xf32, #tpu.memory_space<any>>) dst(%4 : memref<8x32xf32, #tpu.memory_space<any>>)
    return
  }
}

</mosaic_0001>

<llo_original>
// kernel: tpu_custom_call.1
$region0: #{tpu_custom_call.1}
  #allocation0 [shape = 'u32[]', space=smem, size = 0x4, offset = 0x4, fixed_abs, tag = 'smem constant byte address 0x4 - core index']
  #allocation1 [shape = 'u32[144,128]{1,0:T(1,128)}', space=vmem, size = 0x12000, scoped, tag = 'internal scratch']
  #allocation2 [shape = 's32[1]{0}', space=sflag, size = 0x4, scoped, tag = 'scratch operand']
  #allocation3 [shape = 's32[]', space=sflag, size = 0x4, offset = 0, fixed_abs, tag = 'sflag constant byte address 0x0 - dummy sync flag']
  #allocation4 [shape = 'u32[0]{0}', space=smem, size = 0, offset = 0, fixed_abs, tag = 'smem constant byte address 0x0 - null']
  %s0 = inlined_call_operand.hbm [shape: f32[16,32], index: 0, kind: input, shape index: {}]
  %s1 = inlined_call_operand.hbm [shape: f32[16,32], index: 1, kind: output, shape index: {}]
  %s2 = sld [smem:[#allocation0]]
  $region9: #{tpu_custom_call.1} parent=0
    _
  %s4 = ssub.s32 1, %s2
  %s5 = scalar_select 0, %s4, %s2
  loop: start=0, step=1, limit=2
  $region2: #{tpu_custom_call.1} parent=0 // loop_pre_header
    _
  $region3: #{tpu_custom_call.1} parent=0 // loop_header
    %s7 = sphi 0, %s11
    %p8 = scmp.ge.s32.totalorder %s7, 2
  $region4: #{tpu_custom_call.1} parent=0 // loop_header_branch
    %10 = sbr.rel (%p8) target = $region8
  $region5: #{tpu_custom_call.1} parent=0 // loop_body
    %s12 = sadd.s32 %s7, 1
    %s13 = smul.u32 %s7, 8
    %s14 = smul.addr %s13, 16
    %s15 = scalar_lea.hbm %s0, %s14
    %s16 = smul.addr %s13, 16
    %s17 = scalar_lea.hbm %s1, %s16
    %s19 = sshll.u32 1, 14
    %s20 = sxor.u32 4294967295, %s19
    %24 = dma.general %s15, 128, %s17, [#allocation2], 131072, [#allocation4], 0, 0
    %s25 = smul.u32 8, 1
    %s26 = sshll.u32 %s25, 4
    %27 = dma.done [#allocation2], %s26
  $region6: #{tpu_custom_call.1} parent=0 // loop_footer
    %s11 = sadd.s32 1, %s7
  $region7: #{tpu_custom_call.1} parent=0 // loop_footer_branch
    %6 = sbr.rel target = $region3
  $region8: #{tpu_custom_call.1} parent=0 // loop_exit
    _
  %28 = vsyncmov [#allocation2]
  %s29 = vpop.sfrf %28
  %p30 = scmp.eq.s32.totalorder %s29, 0
  %p31 = pneg %p30
  %33 = shalt.err (%p31)

</llo_original>
